<compile_context>
chip_gen: v5e
topology: v5e:2x2
jax: 0.10.0
libtpu: 0.0.40
codegen_flags: <defaults>
</compile_context>

<pallas_src>
import functools

import jax
import jax.numpy as jnp
from jax import lax
from jax.experimental import pallas as pl
from jax.experimental.pallas import tpu as pltpu

LANE = 128
SUBLANE = 8


def _round_up(n, m):
    return ((n + m - 1) // m) * m


def _make_fused_head_kernel(n_layers, n_classes, keep_x, keep_mlp, training):
    """Kernel refs: x, (w_i, b_i) * n_layers, [drop bits...], out."""
    use_dx = training and keep_x < 1.0
    use_dm = training and keep_mlp < 1.0
    n_drop = (1 if use_dx else 0) + ((n_layers - 1) if use_dm else 0)

    def _thresh(keep):
        # keep iff bits < keep * 2^32  (one uint compare + one select per element)
        return jnp.uint32(min(int(keep * (2 ** 32)), 2 ** 32 - 1))

    def kernel(*refs):
        x_ref = refs[0]
        o_ref = refs[-1]
        w_refs = [refs[1 + 2 * i] for i in range(n_layers)]
        b_refs = [refs[2 + 2 * i] for i in range(n_layers)]
        bit_refs = list(refs[1 + 2 * n_layers: 1 + 2 * n_layers + n_drop])

        h = x_ref[...].astype(jnp.float32)

        bi = 0
        if use_dx:  # drop1 (xlmr_drop) on the CLS embedding
            keep = bit_refs[bi][...] < _thresh(keep_x)
            bi += 1
            h = jnp.where(keep, h * (1.0 / keep_x), 0.0)

        for li in range(n_layers):
            h = jnp.dot(h, w_refs[li][...], preferred_element_type=jnp.float32)
            h = h + b_refs[li][...]  # (1, Dout) broadcasts over the batch tile
            if li != n_layers - 1:
                h = jnp.maximum(h, 0.0)  # ReLU
                if use_dm:  # MLP dropout
                    keep = bit_refs[bi][...] < _thresh(keep_mlp)
                    bi += 1
                    h = jnp.where(keep, h * (1.0 / keep_mlp), 0.0)

        # log_softmax over the first n_classes lanes (rest are zero padding).
        col = lax.broadcasted_iota(jnp.int32, h.shape, dimension=1)
        valid = col < n_classes
        z = jnp.where(valid, h, jnp.float32(-1e30))
        m = jnp.max(z, axis=-1, keepdims=True)
        e = jnp.where(valid, jnp.exp(z - m), 0.0)
        s = jnp.sum(e, axis=-1, keepdims=True)
        out = z - m - jnp.log(s)
        o_ref[...] = jnp.where(valid, out, 0.0).astype(o_ref.dtype)

    return kernel, n_drop


def _adaptor_head_forward(cls_hidden, params, rng, *, xlmr_drop, mlp_drop, training):
    """Fused head: Dropout(xlmr_drop) -> MLP -> log_softmax, one pallas_call."""
    B, D0 = cls_hidden.shape
    n_layers = len(params)
    dims = [D0] + [w.shape[1] for w, _ in params]
    n_classes = dims[-1]

    # Lane-pad every feature dim to a 128 multiple; pad/tile the batch axis.
    dims_p = [_round_up(d, LANE) for d in dims]
    TB = 256 if B >= 256 else _round_up(B, SUBLANE)
    Bp = _round_up(B, TB)

    f32 = jnp.float32
    x_p = jnp.zeros((Bp, dims_p[0]), f32).at[:B, :D0].set(cls_hidden.astype(f32))

    inputs = [x_p]
    in_specs = [pl.BlockSpec((TB, dims_p[0]), lambda i: (i, 0))]
    for li, (w_t, b) in enumerate(params):
        din, dout = w_t.shape
        dinp, doutp = dims_p[li], dims_p[li + 1]
        w_p = jnp.zeros((dinp, doutp), f32).at[:din, :dout].set(w_t.astype(f32))
        b_p = jnp.zeros((1, doutp), f32).at[0, :dout].set(b.astype(f32))
        inputs += [w_p, b_p]
        in_specs += [
            pl.BlockSpec((dinp, doutp), lambda i: (0, 0)),  # weights stay resident
            pl.BlockSpec((1, doutp), lambda i: (0, 0)),
        ]

    keep_x = 1.0 - float(xlmr_drop)
    keep_m = 1.0 - float(mlp_drop)
    kernel, n_drop = _make_fused_head_kernel(n_layers, n_classes, keep_x, keep_m, training)

    if n_drop:
        if rng is None:
            raise ValueError("training-mode dropout requires an rng key")
        drop_dims = []
        if training and keep_x < 1.0:
            drop_dims.append(dims_p[0])
        if training and keep_m < 1.0:
            drop_dims += dims_p[1:-1]
        keys = jax.random.split(rng, len(drop_dims))
        for k, dp in zip(keys, drop_dims):
            bits = jax.random.bits(k, (Bp, dp), dtype=jnp.uint32)
            inputs.append(bits)
            in_specs.append(pl.BlockSpec((TB, dp), lambda i: (i, 0)))

    flops = 2 * Bp * sum(dims_p[i] * dims_p[i + 1] for i in range(n_layers))
    transcendentals = Bp * dims_p[-1] + Bp  # exps + per-row log
    bytes_accessed = sum(int(a.size) * a.dtype.itemsize for a in inputs) \
        + Bp * dims_p[-1] * 4
    cost = pl.CostEstimate(flops=flops, transcendentals=transcendentals,
                           bytes_accessed=bytes_accessed)

    out_p = pl.pallas_call(
        kernel,
        out_shape=jax.ShapeDtypeStruct((Bp, dims_p[-1]), cls_hidden.dtype),
        grid=(Bp // TB,),
        in_specs=in_specs,
        out_specs=pl.BlockSpec((TB, dims_p[-1]), lambda i: (i, 0)),
        compiler_params=pltpu.CompilerParams(
            dimension_semantics=("parallel",)),  # megacore-shardable batch axis
        cost_estimate=cost,
    )(*inputs)

    return out_p[:B, :n_classes]


@functools.partial(jax.jit, static_argnames=("xlmr_drop", "mlp_drop", "training"))
def adaptor_head(cls_hidden, params, rng, *, xlmr_drop, mlp_drop, training):
    return _adaptor_head_forward(cls_hidden, params, rng,
                                 xlmr_drop=xlmr_drop, mlp_drop=mlp_drop,
                                 training=training)


def init_mlp_params(key, layers):
    """torch.nn.Linear-style init: W (out, in), b (out,). Stored transposed (in, out)."""
    params = []
    for i in range(1, len(layers)):
        fan_in, fan_out = layers[i - 1], layers[i]
        key, kw, kb = jax.random.split(key, 3)
        bound = 1.0 / (fan_in ** 0.5)
        w = jax.random.uniform(kw, (fan_out, fan_in), jnp.float32, -bound, bound)
        b = jax.random.uniform(kb, (fan_out,), jnp.float32, -bound, bound)
        params.append((w.T, b))  # pre-transpose once (glue, not hot path)
    return params


if __name__ == "__main__":
    # Small shapes consistent with the module: MLP(layers=[32, 64, 64, 8]);
    # 32 stands in for the XLM-R hidden size, 8 for the number of classes.
    layers = [32, 64, 64, 8]
    batch = 8
    dropout_params = {"xlmr_drop": 0.1, "mlp_drop": 0.5}

    key = jax.random.PRNGKey(0)
    kx, kp, kd = jax.random.split(key, 3)
    # TODO(synk): XLM-R encoder not translated; this stands in for last_hidden_state[:, 0].
    cls_hidden = jax.random.normal(kx, (batch, layers[0]), jnp.float32)
    params = init_mlp_params(kp, layers)

    # Training-mode forward (fresh dropout masks derived from `kd`).
    out_train = adaptor_head(cls_hidden, params, kd,
                             xlmr_drop=dropout_params["xlmr_drop"],
                             mlp_drop=dropout_params["mlp_drop"],
                             training=True)
    out_train = jax.block_until_ready(out_train)
    assert out_train.shape == (batch, layers[-1]), out_train.shape
    # log-probs must still normalize to 1 per row.
    assert jnp.allclose(jnp.sum(jnp.exp(out_train), axis=1), 1.0, atol=1e-5)

    # Eval-mode forward, checked against a pure-JAX reference.
    out_eval = jax.block_until_ready(
        adaptor_head(cls_hidden, params, kd,
                     xlmr_drop=dropout_params["xlmr_drop"],
                     mlp_drop=dropout_params["mlp_drop"],
                     training=False))
    ref = cls_hidden
    for i, (w_t, b) in enumerate(params):
        ref = ref @ w_t + b
        if i != len(params) - 1:
            ref = jnp.maximum(ref, 0.0)
    ref = jax.nn.log_softmax(ref, axis=1)
    err = float(jnp.max(jnp.abs(out_eval - ref)))
    assert jnp.allclose(out_eval, ref, atol=1e-5, rtol=1e-5), err

    print("KERNEL_OK")
</pallas_src>

<mosaic_0001>
module attributes {stable_mosaic.version = 11 : i64} {
  func.func @kernel(%arg0: i32, %arg1: memref<8x128xf32, #tpu.memory_space<vmem>>, %arg2: memref<128x128xf32, #tpu.memory_space<vmem>>, %arg3: memref<1x128xf32, #tpu.memory_space<vmem>>, %arg4: memref<128x128xf32, #tpu.memory_space<vmem>>, %arg5: memref<1x128xf32, #tpu.memory_space<vmem>>, %arg6: memref<128x128xf32, #tpu.memory_space<vmem>>, %arg7: memref<1x128xf32, #tpu.memory_space<vmem>>, %arg8: memref<8x128xi32, #tpu.memory_space<vmem>>, %arg9: memref<8x128xi32, #tpu.memory_space<vmem>>, %arg10: memref<8x128xi32, #tpu.memory_space<vmem>>, %arg11: memref<8x128xf32, #tpu.memory_space<vmem>>) attributes {dimension_semantics = [#tpu.dimension_semantics<parallel>], iteration_bounds = array<i64: 1>, scalar_prefetch = 0 : i64, scratch_operands = 0 : i64, tpu.core_type = #tpu.core_type<tc>, window_params = [{transform_indices = @transform_0, window_bounds = array<i64: 8, 128>}, {pipeline_mode = #tpu.pipeline_mode<synchronous>, transform_indices = @transform_1, window_bounds = array<i64: 128, 128>}, {pipeline_mode = #tpu.pipeline_mode<synchronous>, transform_indices = @transform_2, window_bounds = array<i64: 1, 128>}, {pipeline_mode = #tpu.pipeline_mode<synchronous>, transform_indices = @transform_3, window_bounds = array<i64: 128, 128>}, {pipeline_mode = #tpu.pipeline_mode<synchronous>, transform_indices = @transform_4, window_bounds = array<i64: 1, 128>}, {pipeline_mode = #tpu.pipeline_mode<synchronous>, transform_indices = @transform_5, window_bounds = array<i64: 128, 128>}, {pipeline_mode = #tpu.pipeline_mode<synchronous>, transform_indices = @transform_6, window_bounds = array<i64: 1, 128>}, {transform_indices = @transform_7, window_bounds = array<i64: 8, 128>}, {transform_indices = @transform_8, window_bounds = array<i64: 8, 128>}, {transform_indices = @transform_9, window_bounds = array<i64: 8, 128>}, {transform_indices = @transform_10, window_bounds = array<i64: 8, 128>}]} {
    %c0 = arith.constant 0 : index
    %c0_0 = arith.constant 0 : index
    %0 = vector.load %arg1[%c0, %c0_0] : memref<8x128xf32, #tpu.memory_space<vmem>>, vector<8x128xf32>
    %c0_1 = arith.constant 0 : index
    %c0_2 = arith.constant 0 : index
    %1 = vector.load %arg8[%c0_1, %c0_2] : memref<8x128xi32, #tpu.memory_space<vmem>>, vector<8x128xi32>
    %c-429496730_i32 = arith.constant -429496730 : i32
    %2 = vector.broadcast %c-429496730_i32 : i32 to vector<8x128xi32>
    %3 = arith.cmpi ult, %1, %2 : vector<8x128xi32>
    %cst = arith.constant 1.11111116 : f32
    %4 = vector.broadcast %cst : f32 to vector<8x128xf32>
    %5 = arith.mulf %0, %4 : vector<8x128xf32>
    %cst_3 = arith.constant 0.000000e+00 : f32
    %6 = vector.broadcast %cst_3 : f32 to vector<8x128xf32>
    %7 = arith.select %3, %5, %6 : vector<8x128xi1>, vector<8x128xf32>
    %c0_4 = arith.constant 0 : index
    %c0_5 = arith.constant 0 : index
    %8 = vector.load %arg2[%c0_4, %c0_5] : memref<128x128xf32, #tpu.memory_space<vmem>>, vector<128x128xf32>
    %cst_6 = arith.constant dense<0.000000e+00> : vector<8x128xf32>
    %9 = tpu.matmul %7, %8, %cst_6 {dimension_numbers = #tpu.dot_dimension_numbers<[1], [0], [0], [1], [0, 0, 1, 1], [], []>} : vector<8x128xf32>, vector<128x128xf32>, vector<8x128xf32> -> vector<8x128xf32>
    %c0_7 = arith.constant 0 : index
    %c0_8 = arith.constant 0 : index
    %10 = vector.load %arg3[%c0_7, %c0_8] : memref<1x128xf32, #tpu.memory_space<vmem>>, vector<1x128xf32>
    %11 = vector.broadcast %10 : vector<1x128xf32> to vector<8x128xf32>
    %12 = arith.addf %9, %11 : vector<8x128xf32>
    %cst_9 = arith.constant 0.000000e+00 : f32
    %13 = vector.broadcast %cst_9 : f32 to vector<8x128xf32>
    %14 = arith.maximumf %12, %13 : vector<8x128xf32>
    %c0_10 = arith.constant 0 : index
    %c0_11 = arith.constant 0 : index
    %15 = vector.load %arg9[%c0_10, %c0_11] : memref<8x128xi32, #tpu.memory_space<vmem>>, vector<8x128xi32>
    %c-2147483648_i32 = arith.constant -2147483648 : i32
    %16 = vector.broadcast %c-2147483648_i32 : i32 to vector<8x128xi32>
    %17 = arith.cmpi ult, %15, %16 : vector<8x128xi32>
    %cst_12 = arith.constant 2.000000e+00 : f32
    %18 = vector.broadcast %cst_12 : f32 to vector<8x128xf32>
    %19 = arith.mulf %14, %18 : vector<8x128xf32>
    %cst_13 = arith.constant 0.000000e+00 : f32
    %20 = vector.broadcast %cst_13 : f32 to vector<8x128xf32>
    %21 = arith.select %17, %19, %20 : vector<8x128xi1>, vector<8x128xf32>
    %c0_14 = arith.constant 0 : index
    %c0_15 = arith.constant 0 : index
    %22 = vector.load %arg4[%c0_14, %c0_15] : memref<128x128xf32, #tpu.memory_space<vmem>>, vector<128x128xf32>
    %cst_16 = arith.constant dense<0.000000e+00> : vector<8x128xf32>
    %23 = tpu.matmul %21, %22, %cst_16 {dimension_numbers = #tpu.dot_dimension_numbers<[1], [0], [0], [1], [0, 0, 1, 1], [], []>} : vector<8x128xf32>, vector<128x128xf32>, vector<8x128xf32> -> vector<8x128xf32>
    %c0_17 = arith.constant 0 : index
    %c0_18 = arith.constant 0 : index
    %24 = vector.load %arg5[%c0_17, %c0_18] : memref<1x128xf32, #tpu.memory_space<vmem>>, vector<1x128xf32>
    %25 = vector.broadcast %24 : vector<1x128xf32> to vector<8x128xf32>
    %26 = arith.addf %23, %25 : vector<8x128xf32>
    %cst_19 = arith.constant 0.000000e+00 : f32
    %27 = vector.broadcast %cst_19 : f32 to vector<8x128xf32>
    %28 = arith.maximumf %26, %27 : vector<8x128xf32>
    %c0_20 = arith.constant 0 : index
    %c0_21 = arith.constant 0 : index
    %29 = vector.load %arg10[%c0_20, %c0_21] : memref<8x128xi32, #tpu.memory_space<vmem>>, vector<8x128xi32>
    %c-2147483648_i32_22 = arith.constant -2147483648 : i32
    %30 = vector.broadcast %c-2147483648_i32_22 : i32 to vector<8x128xi32>
    %31 = arith.cmpi ult, %29, %30 : vector<8x128xi32>
    %cst_23 = arith.constant 2.000000e+00 : f32
    %32 = vector.broadcast %cst_23 : f32 to vector<8x128xf32>
    %33 = arith.mulf %28, %32 : vector<8x128xf32>
    %cst_24 = arith.constant 0.000000e+00 : f32
    %34 = vector.broadcast %cst_24 : f32 to vector<8x128xf32>
    %35 = arith.select %31, %33, %34 : vector<8x128xi1>, vector<8x128xf32>
    %c0_25 = arith.constant 0 : index
    %c0_26 = arith.constant 0 : index
    %36 = vector.load %arg6[%c0_25, %c0_26] : memref<128x128xf32, #tpu.memory_space<vmem>>, vector<128x128xf32>
    %cst_27 = arith.constant dense<0.000000e+00> : vector<8x128xf32>
    %37 = tpu.matmul %35, %36, %cst_27 {dimension_numbers = #tpu.dot_dimension_numbers<[1], [0], [0], [1], [0, 0, 1, 1], [], []>} : vector<8x128xf32>, vector<128x128xf32>, vector<8x128xf32> -> vector<8x128xf32>
    %c0_28 = arith.constant 0 : index
    %c0_29 = arith.constant 0 : index
    %38 = vector.load %arg7[%c0_28, %c0_29] : memref<1x128xf32, #tpu.memory_space<vmem>>, vector<1x128xf32>
    %39 = vector.broadcast %38 : vector<1x128xf32> to vector<8x128xf32>
    %40 = arith.addf %37, %39 : vector<8x128xf32>
    %41 = tpu.iota {dimensions = array<i32: 1>} : vector<8x128xi32>
    %c8_i32 = arith.constant 8 : i32
    %42 = vector.broadcast %c8_i32 : i32 to vector<8x128xi32>
    %43 = arith.cmpi slt, %41, %42 : vector<8x128xi32>
    %cst_30 = arith.constant -1.000000e+30 : f32
    %44 = vector.broadcast %cst_30 : f32 to vector<8x128xf32>
    %45 = arith.select %43, %40, %44 : vector<8x128xi1>, vector<8x128xf32>
    %cst_31 = arith.constant dense<0xFF800000> : vector<8xf32>
    %46 = vector.multi_reduction <maximumf>, %45, %cst_31 [1] : vector<8x128xf32> to vector<8xf32>
    %47 = vector.shape_cast %46 : vector<8xf32> to vector<8x1xf32>
    %48 = vector.broadcast %47 : vector<8x1xf32> to vector<8x128xf32>
    %49 = arith.subf %45, %48 : vector<8x128xf32>
    %50 = math.exp %49 : vector<8x128xf32>
    %cst_32 = arith.constant 0.000000e+00 : f32
    %51 = vector.broadcast %cst_32 : f32 to vector<8x128xf32>
    %52 = arith.select %43, %50, %51 : vector<8x128xi1>, vector<8x128xf32>
    %cst_33 = arith.constant dense<0.000000e+00> : vector<8xf32>
    %53 = vector.multi_reduction <add>, %52, %cst_33 [1] : vector<8x128xf32> to vector<8xf32>
    %54 = vector.shape_cast %53 : vector<8xf32> to vector<8x1xf32>
    %55 = vector.broadcast %47 : vector<8x1xf32> to vector<8x128xf32>
    %56 = arith.subf %45, %55 : vector<8x128xf32>
    %57 = math.log %54 : vector<8x1xf32>
    %58 = vector.broadcast %57 : vector<8x1xf32> to vector<8x128xf32>
    %59 = arith.subf %56, %58 : vector<8x128xf32>
    %cst_34 = arith.constant 0.000000e+00 : f32
    %60 = vector.broadcast %cst_34 : f32 to vector<8x128xf32>
    %61 = arith.select %43, %59, %60 : vector<8x128xi1>, vector<8x128xf32>
    %c0_35 = arith.constant 0 : index
    %c0_36 = arith.constant 0 : index
    %62 = vector.load %arg11[%c0_35, %c0_36] : memref<8x128xf32, #tpu.memory_space<vmem>>, vector<8x128xf32>
    tpu.vector_store %arg11[%c0_35, %c0_36], %61 {strides = array<i32>} : memref<8x128xf32, #tpu.memory_space<vmem>>, vector<8x128xf32>,
    return
  }
  func.func @transform_0(%arg0: i32) -> (i32, i32) {
    %c0_i32 = arith.constant 0 : i32
    %c0_i32_0 = arith.constant 0 : i32
    return %arg0, %c0_i32 : i32, i32
  }
  func.func @transform_1(%arg0: i32) -> (i32, i32) {
    %c0_i32 = arith.constant 0 : i32
    %c0_i32_0 = arith.constant 0 : i32
    %c0_i32_1 = arith.constant 0 : i32
    return %c0_i32, %c0_i32_0 : i32, i32
  }
  func.func @transform_2(%arg0: i32) -> (i32, i32) {
    %c0_i32 = arith.constant 0 : i32
    %c0_i32_0 = arith.constant 0 : i32
    %c0_i32_1 = arith.constant 0 : i32
    return %c0_i32, %c0_i32_0 : i32, i32
  }
  func.func @transform_3(%arg0: i32) -> (i32, i32) {
    %c0_i32 = arith.constant 0 : i32
    %c0_i32_0 = arith.constant 0 : i32
    %c0_i32_1 = arith.constant 0 : i32
    return %c0_i32, %c0_i32_0 : i32, i32
  }
  func.func @transform_4(%arg0: i32) -> (i32, i32) {
    %c0_i32 = arith.constant 0 : i32
    %c0_i32_0 = arith.constant 0 : i32
    %c0_i32_1 = arith.constant 0 : i32
    return %c0_i32, %c0_i32_0 : i32, i32
  }
  func.func @transform_5(%arg0: i32) -> (i32, i32) {
    %c0_i32 = arith.constant 0 : i32
    %c0_i32_0 = arith.constant 0 : i32
    %c0_i32_1 = arith.constant 0 : i32
    return %c0_i32, %c0_i32_0 : i32, i32
  }
  func.func @transform_6(%arg0: i32) -> (i32, i32) {
    %c0_i32 = arith.constant 0 : i32
    %c0_i32_0 = arith.constant 0 : i32
    %c0_i32_1 = arith.constant 0 : i32
    return %c0_i32, %c0_i32_0 : i32, i32
  }
  func.func @transform_7(%arg0: i32) -> (i32, i32) {
    %c0_i32 = arith.constant 0 : i32
    %c0_i32_0 = arith.constant 0 : i32
    return %arg0, %c0_i32 : i32, i32
  }
  func.func @transform_8(%arg0: i32) -> (i32, i32) {
    %c0_i32 = arith.constant 0 : i32
    %c0_i32_0 = arith.constant 0 : i32
    return %arg0, %c0_i32 : i32, i32
  }
  func.func @transform_9(%arg0: i32) -> (i32, i32) {
    %c0_i32 = arith.constant 0 : i32
    %c0_i32_0 = arith.constant 0 : i32
    return %arg0, %c0_i32 : i32, i32
  }
  func.func @transform_10(%arg0: i32) -> (i32, i32) {
    %c0_i32 = arith.constant 0 : i32
    %c0_i32_0 = arith.constant 0 : i32
    return %arg0, %c0_i32 : i32, i32
  }
}

</mosaic_0001>

<llo_original>
// kernel: adaptor_head.1
$region0: #{adaptor_head.1}
  #allocation0 [shape = 'u32[]', space=smem, size = 0x4, offset = 0x4, fixed_abs, tag = 'smem constant byte address 0x4 - core index']
  #allocation1 [shape = 'u32[72,128]{1,0:T(1,128)}', space=vmem, size = 0x9000, scoped, tag = 'internal scratch']
  %s0 = inlined_call_operand.vmem [shape: f32[8,128], index: 0, kind: input, shape index: {}]
  %s1 = inlined_call_operand.vmem [shape: f32[128,128], index: 1, kind: input, shape index: {}]
  %s2 = inlined_call_operand.vmem [shape: f32[1,128], index: 2, kind: input, shape index: {}]
  %s3 = inlined_call_operand.vmem [shape: f32[128,128], index: 3, kind: input, shape index: {}]
  %s4 = inlined_call_operand.vmem [shape: f32[1,128], index: 4, kind: input, shape index: {}]
  %s5 = inlined_call_operand.vmem [shape: f32[128,128], index: 5, kind: input, shape index: {}]
  %s6 = inlined_call_operand.vmem [shape: f32[1,128], index: 6, kind: input, shape index: {}]
  %s7 = inlined_call_operand.vmem [shape: u32[8,128], index: 7, kind: input, shape index: {}]
  %s8 = inlined_call_operand.vmem [shape: u32[8,128], index: 8, kind: input, shape index: {}]
  %s9 = inlined_call_operand.vmem [shape: u32[8,128], index: 9, kind: input, shape index: {}]
  %s10 = inlined_call_operand.hbm [shape: f32[8,128], index: 10, kind: output, shape index: {}]
  %s11 = sld [smem:[#allocation0]]
  $region50: #{adaptor_head.1} parent=0
    _
  %s13 = ssub.s32 1, %s11
  %s14 = scalar_select 0, %s13, %s11
  $region1: #{adaptor_head.1} parent=0
    #allocation2 [shape = 'u8[4096]{0}', space=vmem, size = 0x1000, scoped, tag = 'output window, operand 0, single buffered']
    #allocation3 [shape = 's32[1]{0}', space=sflag, size = 0x4, scoped, tag = 'scoped memory for adaptor_head.1']
    %15 = vsyncpa [#allocation3], 0
    // Predicated region
    $region2: #{adaptor_head.1} parent=1 // pred_check
      _
    $region3: #{adaptor_head.1} parent=1 // pred_check_branch
      %17 = sbr.rel (0) target = $region5
    $region4: #{adaptor_head.1} parent=1 // pred_region
      _
    $region5: #{adaptor_head.1} parent=1 // pred_fallthru
      _
    // Predicated region
    $region6: #{adaptor_head.1} parent=1 // pred_check
      _
    $region7: #{adaptor_head.1} parent=1 // pred_check_branch
      %19 = sbr.rel (0) target = $region9
    $region8: #{adaptor_head.1} parent=1 // pred_region
      _
    $region9: #{adaptor_head.1} parent=1 // pred_fallthru
      _
    // Predicated region
    $region10: #{adaptor_head.1} parent=1 // pred_check
      _
    $region11: #{adaptor_head.1} parent=1 // pred_check_branch
      %21 = sbr.rel (0) target = $region13
    $region12: #{adaptor_head.1} parent=1 // pred_region
      _
    $region13: #{adaptor_head.1} parent=1 // pred_fallthru
      _
    // Predicated region
    $region14: #{adaptor_head.1} parent=1 // pred_check
      _
    $region15: #{adaptor_head.1} parent=1 // pred_check_branch
      %23 = sbr.rel (0) target = $region17
    $region16: #{adaptor_head.1} parent=1 // pred_region
      _
    $region17: #{adaptor_head.1} parent=1 // pred_fallthru
      _
    // Predicated region
    $region18: #{adaptor_head.1} parent=1 // pred_check
      _
    $region19: #{adaptor_head.1} parent=1 // pred_check_branch
      %25 = sbr.rel (0) target = $region21
    $region20: #{adaptor_head.1} parent=1 // pred_region
      _
    $region21: #{adaptor_head.1} parent=1 // pred_fallthru
      _
    // Predicated region
    $region22: #{adaptor_head.1} parent=1 // pred_check
      _
    $region23: #{adaptor_head.1} parent=1 // pred_check_branch
      %27 = sbr.rel (0) target = $region25
    $region24: #{adaptor_head.1} parent=1 // pred_region
      _
    $region25: #{adaptor_head.1} parent=1 // pred_fallthru
      _
    // Predicated region
    $region26: #{adaptor_head.1} parent=1 // pred_check
      _
    $region27: #{adaptor_head.1} parent=1 // pred_check_branch
      %29 = sbr.rel (0) target = $region29
    $region28: #{adaptor_head.1} parent=1 // pred_region
      _
    $region29: #{adaptor_head.1} parent=1 // pred_fallthru
      _
    // Predicated region
    $region30: #{adaptor_head.1} parent=1 // pred_check
      _
    $region31: #{adaptor_head.1} parent=1 // pred_check_branch
      %31 = sbr.rel (0) target = $region33
    $region32: #{adaptor_head.1} parent=1 // pred_region
      _
    $region33: #{adaptor_head.1} parent=1 // pred_fallthru
      _
    // Predicated region
    $region34: #{adaptor_head.1} parent=1 // pred_check
      _
    $region35: #{adaptor_head.1} parent=1 // pred_check_branch
      %33 = sbr.rel (0) target = $region37
    $region36: #{adaptor_head.1} parent=1 // pred_region
      _
    $region37: #{adaptor_head.1} parent=1 // pred_fallthru
      _
    // Predicated region
    $region38: #{adaptor_head.1} parent=1 // pred_check
      _
    $region39: #{adaptor_head.1} parent=1 // pred_check_branch
      %35 = sbr.rel (0) target = $region41
    $region40: #{adaptor_head.1} parent=1 // pred_region
      _
    $region41: #{adaptor_head.1} parent=1 // pred_fallthru
      _
    %v36 = vld [vmem:[%s0] sm:$0xff]
    %v37 = vld [vmem:[%s7] sm:$0xff]
    %v38 = vadd.s32 %v37, 2147483648
    %vm40 = vcmp.lt.s32.totalorder %v38, 1717986918
    %v41 = vmul.f32 %v36, 1.1111112
    %v42 = vsel %vm40, %v41, 0.0
    %v43 = vld [vmem:[%s1] sm:$0xff]
    %v44 = vld [vmem:[%s1 + $0x8] sm:$0xff]
    %v45 = vld [vmem:[%s1 + $0x10] sm:$0xff]
    %v46 = vld [vmem:[%s1 + $0x18] sm:$0xff]
    %v47 = vld [vmem:[%s1 + $0x20] sm:$0xff]
    %v48 = vld [vmem:[%s1 + $0x28] sm:$0xff]
    %v49 = vld [vmem:[%s1 + $0x30] sm:$0xff]
    %v50 = vld [vmem:[%s1 + $0x38] sm:$0xff]
    %v51 = vld [vmem:[%s1 + $0x40] sm:$0xff]
    %v52 = vld [vmem:[%s1 + $0x48] sm:$0xff]
    %v53 = vld [vmem:[%s1 + $0x50] sm:$0xff]
    %v54 = vld [vmem:[%s1 + $0x58] sm:$0xff]
    %v55 = vld [vmem:[%s1 + $0x60] sm:$0xff]
    %v56 = vld [vmem:[%s1 + $0x68] sm:$0xff]
    %v57 = vld [vmem:[%s1 + $0x70] sm:$0xff]
    %v58 = vld [vmem:[%s1 + $0x78] sm:$0xff]
    %v59 = vld [vmem:[%s2] sm:$0x1]
    %v61 = vperm.slane %v59, 0
    %63 = vmatpush.msra.mxu0 %v58
    %64 = vmatpush.msra.mxu0 %v57
    %65 = vmatpush.msra.mxu0 %v56
    %66 = vmatpush.msra.mxu0 %v55
    %67 = vmatpush.msra.mxu0 %v54
    %68 = vmatpush.msra.mxu0 %v53
    %69 = vmatpush.msra.mxu0 %v52
    %70 = vmatpush.msra.mxu0 %v51
    %71 = vmatpush.msra.mxu0 %v50
    %72 = vmatpush.msra.mxu0 %v49
    %73 = vmatpush.msra.mxu0 %v48
    %74 = vmatpush.msra.mxu0 %v47
    %75 = vmatpush.msra.mxu0 %v46
    %76 = vmatpush.msra.mxu0 %v45
    %77 = vmatpush.msra.mxu0 %v44
    %78 = vmatpush.msra.mxu0 %v43
    %79 = vmatmul.f32.gmra.mxu0 %v42
    %v80 = vpop.f32.mrf.mxu0
    %v81 = vadd.f32 %v61, %v80
    %82 = vdwg.mxu0
    %v83 = vmax.f32 %v81, 0.0
    %v84 = vld [vmem:[%s8] sm:$0xff]
    %v85 = vadd.s32 %v84, 2147483648
    %vm87 = vcmp.lt.s32.totalorder %v85, 0
    %v88 = vmul.f32 %v83, 2.0
    %v89 = vsel %vm87, %v88, 0.0
    %v90 = vld [vmem:[%s3] sm:$0xff]
    %v91 = vld [vmem:[%s3 + $0x8] sm:$0xff]
    %v92 = vld [vmem:[%s3 + $0x10] sm:$0xff]
    %v93 = vld [vmem:[%s3 + $0x18] sm:$0xff]
    %v94 = vld [vmem:[%s3 + $0x20] sm:$0xff]
    %v95 = vld [vmem:[%s3 + $0x28] sm:$0xff]
    %v96 = vld [vmem:[%s3 + $0x30] sm:$0xff]
    %v97 = vld [vmem:[%s3 + $0x38] sm:$0xff]
    %v98 = vld [vmem:[%s3 + $0x40] sm:$0xff]
    %v99 = vld [vmem:[%s3 + $0x48] sm:$0xff]
    %v100 = vld [vmem:[%s3 + $0x50] sm:$0xff]
    %v101 = vld [vmem:[%s3 + $0x58] sm:$0xff]
    %v102 = vld [vmem:[%s3 + $0x60] sm:$0xff]
    %v103 = vld [vmem:[%s3 + $0x68] sm:$0xff]
    %v104 = vld [vmem:[%s3 + $0x70] sm:$0xff]
    %v105 = vld [vmem:[%s3 + $0x78] sm:$0xff]
    %v106 = vld [vmem:[%s4] sm:$0x1]
    %v108 = vperm.slane %v106, 0
    %110 = vmatpush.msra.mxu0 %v105
    %111 = vmatpush.msra.mxu0 %v104
    %112 = vmatpush.msra.mxu0 %v103
    %113 = vmatpush.msra.mxu0 %v102
    %114 = vmatpush.msra.mxu0 %v101
    %115 = vmatpush.msra.mxu0 %v100
    %116 = vmatpush.msra.mxu0 %v99
    %117 = vmatpush.msra.mxu0 %v98
    %118 = vmatpush.msra.mxu0 %v97
    %119 = vmatpush.msra.mxu0 %v96
    %120 = vmatpush.msra.mxu0 %v95
    %121 = vmatpush.msra.mxu0 %v94
    %122 = vmatpush.msra.mxu0 %v93
    %123 = vmatpush.msra.mxu0 %v92
    %124 = vmatpush.msra.mxu0 %v91
    %125 = vmatpush.msra.mxu0 %v90
    %126 = vmatmul.f32.gmra.mxu0 %v89
    %v127 = vpop.f32.mrf.mxu0
    %v128 = vadd.f32 %v108, %v127
    %129 = vdwg.mxu0
    %v130 = vmax.f32 %v128, 0.0
    %v131 = vld [vmem:[%s9] sm:$0xff]
    %v132 = vadd.s32 %v131, 2147483648
    %vm134 = vcmp.lt.s32.totalorder %v132, 0
    %v135 = vmul.f32 %v130, 2.0
    %v136 = vsel %vm134, %v135, 0.0
    %v137 = vld [vmem:[%s5] sm:$0xff]
    %v138 = vld [vmem:[%s5 + $0x8] sm:$0xff]
    %v139 = vld [vmem:[%s5 + $0x10] sm:$0xff]
    %v140 = vld [vmem:[%s5 + $0x18] sm:$0xff]
    %v141 = vld [vmem:[%s5 + $0x20] sm:$0xff]
    %v142 = vld [vmem:[%s5 + $0x28] sm:$0xff]
    %v143 = vld [vmem:[%s5 + $0x30] sm:$0xff]
    %v144 = vld [vmem:[%s5 + $0x38] sm:$0xff]
    %v145 = vld [vmem:[%s5 + $0x40] sm:$0xff]
    %v146 = vld [vmem:[%s5 + $0x48] sm:$0xff]
    %v147 = vld [vmem:[%s5 + $0x50] sm:$0xff]
    %v148 = vld [vmem:[%s5 + $0x58] sm:$0xff]
    %v149 = vld [vmem:[%s5 + $0x60] sm:$0xff]
    %v150 = vld [vmem:[%s5 + $0x68] sm:$0xff]
    %v151 = vld [vmem:[%s5 + $0x70] sm:$0xff]
    %v152 = vld [vmem:[%s5 + $0x78] sm:$0xff]
    %v153 = vld [vmem:[%s6] sm:$0x1]
    %v155 = vperm.slane %v153, 0
    %157 = vmatpush.msra.mxu0 %v152
    %158 = vmatpush.msra.mxu0 %v151
    %159 = vmatpush.msra.mxu0 %v150
    %160 = vmatpush.msra.mxu0 %v149
    %161 = vmatpush.msra.mxu0 %v148
    %162 = vmatpush.msra.mxu0 %v147
    %163 = vmatpush.msra.mxu0 %v146
    %164 = vmatpush.msra.mxu0 %v145
    %165 = vmatpush.msra.mxu0 %v144
    %166 = vmatpush.msra.mxu0 %v143
    %167 = vmatpush.msra.mxu0 %v142
    %168 = vmatpush.msra.mxu0 %v141
    %169 = vmatpush.msra.mxu0 %v140
    %170 = vmatpush.msra.mxu0 %v139
    %171 = vmatpush.msra.mxu0 %v138
    %172 = vmatpush.msra.mxu0 %v137
    %173 = vmatmul.f32.gmra.mxu0 %v136
    %v174 = vpop.f32.mrf.mxu0
    %v175 = vadd.f32 %v155, %v174
    %176 = vdwg.mxu0
    %v177 = vlaneseq
    %v178 = vand.u32 %v177, 127
    %vm179 = vcmp.lt.s32.totalorder %v178, 8
    %v180 = vsel %vm179, %v175, -1e+30
    %181 = vmax.xlane.f32.xlu0 %v180
    %v182 = vpop.xlane.xlu0 %181
    %v183 = vsub.f32 %v180, %v182
    %v184 = vmul.f32 %v183, 1.442695
    %v185 = vpow.pop %v184
    %v186 = vsel %vm179, %v185, 0.0
    %187 = vadd.xlane.f32.xlu0 %v186
    %v188 = vpop.xlane.xlu0 %187
    %v189 = vlog2.pop %v188
    %v190 = vmul.f32 %v189, 0.6931472
    %v191 = vsub.f32 %v183, %v190
    %v192 = vsel %vm179, %v191, 0.0
    %193 = vst [vmem:[#allocation2] sm:$0xff] %v192
    // Predicated region
    $region42: #{adaptor_head.1} parent=1 // pred_check
      _
    $region43: #{adaptor_head.1} parent=1 // pred_check_branch
      %195 = sbr.rel (0) target = $region45
    $region44: #{adaptor_head.1} parent=1 // pred_region
      %197 = vsyncadd [#allocation3], 0
      %s199 = sshll.u32 [#allocation2], 4
      %s200 = int_to_ptr.vmem [resolvable:$true] %s199
      %s201 = sshll.u32 %s10, 4
      %s202 = int_to_ptr.hbm [resolvable:$true] %s201
      %204 = dma.vmem_to_hbm [thread:$0]  %s200, 128, %s202, [#allocation3]
    $region45: #{adaptor_head.1} parent=1 // pred_fallthru
      _
    // Predicated region
    $region46: #{adaptor_head.1} parent=1 // pred_check
      _
    $region47: #{adaptor_head.1} parent=1 // pred_check_branch
      %206 = sbr.rel (0) target = $region49
    $region48: #{adaptor_head.1} parent=1 // pred_region
      %208 = dma.done [#allocation3], 128
    $region49: #{adaptor_head.1} parent=1 // pred_fallthru
      _
    %209 = vsyncpa [#allocation3], 1

</llo_original>
